<compile_context>
chip_gen: v6e
topology: v6e:2x2x1
jax: 0.10.0
libtpu: 0.0.40
codegen_flags: <defaults>
</compile_context>

<pallas_src>
import jax
import jax.numpy as jnp
from jax import lax
from jax.experimental import pallas as pl
from jax.experimental.pallas import tpu as pltpu


# Same dimension numbers the official TPU flash-attention kernel uses for an
# A @ B^T matmul: contract dim 1 of lhs with dim 1 of rhs.
NT_DIM_NUMBERS = (((1,), (1,)), ((), ()))


def _round_up(n, m):
    return ((n + m - 1) // m) * m


def sklearn_net_kernel(x_ref, w1_ref, b1_ref, w2_ref, b2_ref, w3t_ref, b3_ref,
                       o_ref):
    # x: (TB, 30).  The 1/5000 scale is already folded into w1.
    x = x_ref[...]

    # Linear(30, 50) + ReLU   (batch on sublanes, features on lanes)
    h1 = jnp.dot(x, w1_ref[...], preferred_element_type=jnp.float32)
    h1 = jnp.maximum(h1 + b1_ref[...], 0.0)

    # Linear(50, 50) + ReLU
    h2 = jnp.dot(h1, w2_ref[...], preferred_element_type=jnp.float32)
    h2 = jnp.maximum(h2 + b2_ref[...], 0.0)

    # Linear(50, 1) + Sigmoid, computed transposed so the result is (1, TB):
    # batch maps to lanes -> lane-dense, unmasked output stores.
    h3 = lax.dot_general(w3t_ref[...], h2, NT_DIM_NUMBERS,
                         preferred_element_type=jnp.float32)
    h3 = h3 + b3_ref[...]                       # b3: (1, 1) broadcasts over lanes
    o_ref[...] = pl.reciprocal(1.0 + jnp.exp(-h3), approx=True).astype(o_ref.dtype)


def sklearn_net_forward(x, params, *, block_batch=2048):
    """x: (B, 30) float32 -> (B, 1) float32 (same semantics as SklearnNet)."""
    w1, b1, w2, b2, w3, b3 = params
    B, F = x.shape
    assert F == 30

    # Fold the x/5000 scaling into the first weight matrix (tiny one-time op).
    w1s = w1 * jnp.float32(1.0 / 5000.0)
    # Last layer in (out, in) = (1, 50) layout for the NT matmul.
    w3t = w3.T
    b3r = b3.reshape(1, 1)

    # Batch tile: multiple of 128 so the lane-dense output block needs no
    # masking; small batches collapse to a single tile.  For production sizes
    # block_batch ~ 2K (v5e) .. 8K (v7x) rows per step amortizes the ~0.35us
    # per-grid-step overhead while staying far below the scoped VMEM limit.
    tb = min(block_batch, _round_up(B, 128))
    padded_b = _round_up(B, tb)
    if padded_b != B:
        # Ragged last tile: zero-pad; padded rows produce finite garbage that
        # is sliced off below.
        x = jnp.pad(x, ((0, padded_b - B), (0, 0)))
    num_tiles = padded_b // tb

    # Full-array blocks with a constant index_map -> stay VMEM-resident.
    const = lambda shape: pl.BlockSpec(shape, lambda i, _s=shape: (0,) * len(_s))

    param_bytes = 4 * sum(int(p.size) for p in (w1, b1, w2, b2, w3, b3))
    cost = pl.CostEstimate(
        flops=2 * padded_b * (30 * 50 + 50 * 50 + 50 * 1),
        transcendentals=2 * padded_b,                      # exp + reciprocal
        bytes_accessed=padded_b * 30 * 4 + padded_b * 4 + param_bytes,
    )

    out_t = pl.pallas_call(
        sklearn_net_kernel,
        out_shape=jax.ShapeDtypeStruct((1, padded_b), jnp.float32),
        grid_spec=pltpu.PrefetchScalarGridSpec(
            num_scalar_prefetch=0,
            grid=(num_tiles,),
            in_specs=[
                pl.BlockSpec((tb, 30), lambda i: (i, 0)),   # x streamed per tile
                const(w1s.shape), const(b1.shape),
                const(w2.shape), const(b2.shape),
                const(w3t.shape), const(b3r.shape),
            ],
            out_specs=pl.BlockSpec((1, tb), lambda i: (0, i)),
        ),
        compiler_params=pltpu.CompilerParams(
            dimension_semantics=("parallel",)),
        cost_estimate=cost,
    )(x, w1s, b1, w2, b2, w3t, b3r)

    # (1, padded_B) lane-dense result -> (B, 1) to match the PyTorch module.
    return out_t.reshape(padded_b, 1)[:B]


def init_params(key):
    """PyTorch-style init: U(-1/sqrt(fan_in), 1/sqrt(fan_in)).

    Weights stored (in, out) so the kernel does x @ W directly (equivalent to
    torch's x @ W_torch.T).
    """
    dims = [(30, 50), (50, 50), (50, 1)]
    params = []
    for (fan_in, fan_out) in dims:
        key, kw, kb = jax.random.split(key, 3)
        bound = 1.0 / jnp.sqrt(jnp.float32(fan_in))
        w = jax.random.uniform(kw, (fan_in, fan_out), jnp.float32, -bound, bound)
        b = jax.random.uniform(kb, (1, fan_out), jnp.float32, -bound, bound)
        params += [w, b]
    return tuple(params)


if __name__ == "__main__":
    key = jax.random.PRNGKey(0)
    key, kx = jax.random.split(key)

    batch = 8
    x = jax.random.uniform(kx, (batch, 30), jnp.float32, 0.0, 10000.0)
    params = init_params(key)

    out = sklearn_net_forward(x, params)
    out = jax.block_until_ready(out)

    # Pure-JAX reference with the original module semantics.
    w1, b1, w2, b2, w3, b3 = params
    xr = x / 5000.0
    h = jnp.maximum(xr @ w1 + b1, 0.0)
    h = jnp.maximum(h @ w2 + b2, 0.0)
    ref = jax.nn.sigmoid(h @ w3 + b3)

    assert out.shape == (batch, 1)
    # Tolerance covers the approximate EUP reciprocal used for the sigmoid.
    assert jnp.allclose(out, ref, atol=5e-3, rtol=5e-3), float(
        jnp.max(jnp.abs(out - ref)))

    print("KERNEL_OK")
</pallas_src>

<mosaic_0001>
module attributes {stable_mosaic.version = 11 : i64} {
  func.func @sklearn_net_kernel(%arg0: i32, %arg1: memref<128x30xf32, #tpu.memory_space<vmem>>, %arg2: memref<30x50xf32, #tpu.memory_space<vmem>>, %arg3: memref<1x50xf32, #tpu.memory_space<vmem>>, %arg4: memref<50x50xf32, #tpu.memory_space<vmem>>, %arg5: memref<1x50xf32, #tpu.memory_space<vmem>>, %arg6: memref<1x50xf32, #tpu.memory_space<vmem>>, %arg7: memref<1x1xf32, #tpu.memory_space<vmem>>, %arg8: memref<1x128xf32, #tpu.memory_space<vmem>>) attributes {dimension_semantics = [#tpu.dimension_semantics<parallel>], iteration_bounds = array<i64: 1>, scalar_prefetch = 0 : i64, scratch_operands = 0 : i64, tpu.core_type = #tpu.core_type<tc>, window_params = [{transform_indices = @transform_0, window_bounds = array<i64: 128, 30>}, {pipeline_mode = #tpu.pipeline_mode<synchronous>, transform_indices = @transform_1, window_bounds = array<i64: 30, 50>}, {pipeline_mode = #tpu.pipeline_mode<synchronous>, transform_indices = @transform_2, window_bounds = array<i64: 1, 50>}, {pipeline_mode = #tpu.pipeline_mode<synchronous>, transform_indices = @transform_3, window_bounds = array<i64: 50, 50>}, {pipeline_mode = #tpu.pipeline_mode<synchronous>, transform_indices = @transform_4, window_bounds = array<i64: 1, 50>}, {pipeline_mode = #tpu.pipeline_mode<synchronous>, transform_indices = @transform_5, window_bounds = array<i64: 1, 50>}, {pipeline_mode = #tpu.pipeline_mode<synchronous>, transform_indices = @transform_6, window_bounds = array<i64: 1, 1>}, {transform_indices = @transform_7, window_bounds = array<i64: 1, 128>}]} {
    %c0 = arith.constant 0 : index
    %c0_0 = arith.constant 0 : index
    %0 = vector.load %arg1[%c0, %c0_0] : memref<128x30xf32, #tpu.memory_space<vmem>>, vector<128x30xf32>
    %c0_1 = arith.constant 0 : index
    %c0_2 = arith.constant 0 : index
    %1 = vector.load %arg2[%c0_1, %c0_2] : memref<30x50xf32, #tpu.memory_space<vmem>>, vector<30x50xf32>
    %cst = arith.constant dense<0.000000e+00> : vector<128x50xf32>
    %2 = tpu.matmul %0, %1, %cst {dimension_numbers = #tpu.dot_dimension_numbers<[1], [0], [0], [1], [0, 0, 1, 1], [], []>} : vector<128x30xf32>, vector<30x50xf32>, vector<128x50xf32> -> vector<128x50xf32>
    %c0_3 = arith.constant 0 : index
    %c0_4 = arith.constant 0 : index
    %3 = vector.load %arg3[%c0_3, %c0_4] : memref<1x50xf32, #tpu.memory_space<vmem>>, vector<1x50xf32>
    %4 = vector.broadcast %3 : vector<1x50xf32> to vector<128x50xf32>
    %5 = arith.addf %2, %4 : vector<128x50xf32>
    %cst_5 = arith.constant 0.000000e+00 : f32
    %6 = vector.broadcast %cst_5 : f32 to vector<128x50xf32>
    %7 = arith.maximumf %5, %6 : vector<128x50xf32>
    %c0_6 = arith.constant 0 : index
    %c0_7 = arith.constant 0 : index
    %8 = vector.load %arg4[%c0_6, %c0_7] : memref<50x50xf32, #tpu.memory_space<vmem>>, vector<50x50xf32>
    %cst_8 = arith.constant dense<0.000000e+00> : vector<128x50xf32>
    %9 = tpu.matmul %7, %8, %cst_8 {dimension_numbers = #tpu.dot_dimension_numbers<[1], [0], [0], [1], [0, 0, 1, 1], [], []>} : vector<128x50xf32>, vector<50x50xf32>, vector<128x50xf32> -> vector<128x50xf32>
    %c0_9 = arith.constant 0 : index
    %c0_10 = arith.constant 0 : index
    %10 = vector.load %arg5[%c0_9, %c0_10] : memref<1x50xf32, #tpu.memory_space<vmem>>, vector<1x50xf32>
    %11 = vector.broadcast %10 : vector<1x50xf32> to vector<128x50xf32>
    %12 = arith.addf %9, %11 : vector<128x50xf32>
    %cst_11 = arith.constant 0.000000e+00 : f32
    %13 = vector.broadcast %cst_11 : f32 to vector<128x50xf32>
    %14 = arith.maximumf %12, %13 : vector<128x50xf32>
    %c0_12 = arith.constant 0 : index
    %c0_13 = arith.constant 0 : index
    %15 = vector.load %arg6[%c0_12, %c0_13] : memref<1x50xf32, #tpu.memory_space<vmem>>, vector<1x50xf32>
    %cst_14 = arith.constant dense<0.000000e+00> : vector<1x128xf32>
    %16 = tpu.matmul %15, %14, %cst_14 {dimension_numbers = #tpu.dot_dimension_numbers<[1], [1], [0], [0], [0, 0, 1, 0], [], []>} : vector<1x50xf32>, vector<128x50xf32>, vector<1x128xf32> -> vector<1x128xf32>
    %c0_15 = arith.constant 0 : index
    %c0_16 = arith.constant 0 : index
    %17 = vector.load %arg7[%c0_15, %c0_16] : memref<1x1xf32, #tpu.memory_space<vmem>>, vector<1x1xf32>
    %18 = vector.broadcast %17 : vector<1x1xf32> to vector<1x128xf32>
    %19 = arith.addf %16, %18 : vector<1x128xf32>
    %cst_17 = arith.constant 0.000000e+00 : f32
    %20 = vector.broadcast %cst_17 : f32 to vector<1x128xf32>
    %21 = arith.subf %20, %19 : vector<1x128xf32>
    %22 = math.exp %21 : vector<1x128xf32>
    %cst_18 = arith.constant 1.000000e+00 : f32
    %23 = vector.broadcast %cst_18 : f32 to vector<1x128xf32>
    %24 = arith.addf %23, %22 : vector<1x128xf32>
    %25 = tpu.reciprocal %24 {approx = true} : vector<1x128xf32> -> vector<1x128xf32>
    %c0_19 = arith.constant 0 : index
    %c0_20 = arith.constant 0 : index
    %26 = vector.load %arg8[%c0_19, %c0_20] : memref<1x128xf32, #tpu.memory_space<vmem>>, vector<1x128xf32>
    tpu.vector_store %arg8[%c0_19, %c0_20], %25 {strides = array<i32>} : memref<1x128xf32, #tpu.memory_space<vmem>>, vector<1x128xf32>,
    return
  }
  func.func @transform_0(%arg0: i32) -> (i32, i32) {
    %c0_i32 = arith.constant 0 : i32
    %c0_i32_0 = arith.constant 0 : i32
    return %arg0, %c0_i32 : i32, i32
  }
  func.func @transform_1(%arg0: i32) -> (i32, i32) {
    %c0_i32 = arith.constant 0 : i32
    %c0_i32_0 = arith.constant 0 : i32
    %c0_i32_1 = arith.constant 0 : i32
    return %c0_i32, %c0_i32_0 : i32, i32
  }
  func.func @transform_2(%arg0: i32) -> (i32, i32) {
    %c0_i32 = arith.constant 0 : i32
    %c0_i32_0 = arith.constant 0 : i32
    %c0_i32_1 = arith.constant 0 : i32
    return %c0_i32, %c0_i32_0 : i32, i32
  }
  func.func @transform_3(%arg0: i32) -> (i32, i32) {
    %c0_i32 = arith.constant 0 : i32
    %c0_i32_0 = arith.constant 0 : i32
    %c0_i32_1 = arith.constant 0 : i32
    return %c0_i32, %c0_i32_0 : i32, i32
  }
  func.func @transform_4(%arg0: i32) -> (i32, i32) {
    %c0_i32 = arith.constant 0 : i32
    %c0_i32_0 = arith.constant 0 : i32
    %c0_i32_1 = arith.constant 0 : i32
    return %c0_i32, %c0_i32_0 : i32, i32
  }
  func.func @transform_5(%arg0: i32) -> (i32, i32) {
    %c0_i32 = arith.constant 0 : i32
    %c0_i32_0 = arith.constant 0 : i32
    %c0_i32_1 = arith.constant 0 : i32
    return %c0_i32, %c0_i32_0 : i32, i32
  }
  func.func @transform_6(%arg0: i32) -> (i32, i32) {
    %c0_i32 = arith.constant 0 : i32
    %c0_i32_0 = arith.constant 0 : i32
    %c0_i32_1 = arith.constant 0 : i32
    return %c0_i32, %c0_i32_0 : i32, i32
  }
  func.func @transform_7(%arg0: i32) -> (i32, i32) {
    %c0_i32 = arith.constant 0 : i32
    %c0_i32_0 = arith.constant 0 : i32
    return %c0_i32, %arg0 : i32, i32
  }
}

</mosaic_0001>

<llo_original>
// kernel: tpu_custom_call.1
$region0: #{tpu_custom_call.1}
  #allocation0 [shape = 'u32[]', space=smem, size = 0x4, offset = 0x4, fixed_abs, tag = 'smem constant byte address 0x4 - core index']
  #allocation1 [shape = 'u32[144,128]{1,0:T(1,128)}', space=vmem, size = 0x12000, scoped, tag = 'internal scratch']
  #allocation2 [shape = 'f32[1,1]{1,0:T(1,128)S(1)}', space=vmem, size = 0x200, scoped, tag = 'scoped memory for tpu_custom_call.1']
  %s0 = inlined_call_operand.vmem [shape: f32[128,30], index: 0, kind: input, shape index: {}]
  %s1 = inlined_call_operand.vmem [shape: f32[30,50], index: 1, kind: input, shape index: {}]
  %s2 = inlined_call_operand.vmem [shape: f32[1,50], index: 2, kind: input, shape index: {}]
  %s3 = inlined_call_operand.vmem [shape: f32[50,50], index: 3, kind: input, shape index: {}]
  %s4 = inlined_call_operand.vmem [shape: f32[1,50], index: 4, kind: input, shape index: {}]
  %s5 = inlined_call_operand.vmem [shape: f32[1,50], index: 5, kind: input, shape index: {}]
  %s6 = inlined_call_operand.<no memory space> [shape: f32[1,1], index: 6, kind: input, shape index: {}]
  %s7 = inlined_call_operand.hbm [shape: f32[1,128], index: 7, kind: output, shape index: {}]
  %s8 = sld [smem:[#allocation0]]
  $region38: #{tpu_custom_call.1} parent=0
    _
  %s10 = ssub.s32 1, %s8
  %s11 = scalar_select 0, %s10, %s8
  %v12 = vstv %s6
  %13 = vst [vmem:[#allocation2] sm:$0x1] %v12
  $region1: #{tpu_custom_call.1} parent=0
    #allocation3 [shape = 'u8[512]{0}', space=vmem, size = 0x400, scoped, tag = 'output window, operand 0, single buffered']
    #allocation4 [shape = 's32[1]{0}', space=sflag, size = 0x4, scoped, tag = 'scoped memory for tpu_custom_call.1']
    %14 = vsyncpa [#allocation4], 0
    // Predicated region
    $region2: #{tpu_custom_call.1} parent=1 // pred_check
      _
    $region3: #{tpu_custom_call.1} parent=1 // pred_check_branch
      %16 = sbr.rel (0) target = $region5
    $region4: #{tpu_custom_call.1} parent=1 // pred_region
      _
    $region5: #{tpu_custom_call.1} parent=1 // pred_fallthru
      _
    // Predicated region
    $region6: #{tpu_custom_call.1} parent=1 // pred_check
      _
    $region7: #{tpu_custom_call.1} parent=1 // pred_check_branch
      %18 = sbr.rel (0) target = $region9
    $region8: #{tpu_custom_call.1} parent=1 // pred_region
      _
    $region9: #{tpu_custom_call.1} parent=1 // pred_fallthru
      _
    // Predicated region
    $region10: #{tpu_custom_call.1} parent=1 // pred_check
      _
    $region11: #{tpu_custom_call.1} parent=1 // pred_check_branch
      %20 = sbr.rel (0) target = $region13
    $region12: #{tpu_custom_call.1} parent=1 // pred_region
      _
    $region13: #{tpu_custom_call.1} parent=1 // pred_fallthru
      _
    // Predicated region
    $region14: #{tpu_custom_call.1} parent=1 // pred_check
      _
    $region15: #{tpu_custom_call.1} parent=1 // pred_check_branch
      %22 = sbr.rel (0) target = $region17
    $region16: #{tpu_custom_call.1} parent=1 // pred_region
      _
    $region17: #{tpu_custom_call.1} parent=1 // pred_fallthru
      _
    // Predicated region
    $region18: #{tpu_custom_call.1} parent=1 // pred_check
      _
    $region19: #{tpu_custom_call.1} parent=1 // pred_check_branch
      %24 = sbr.rel (0) target = $region21
    $region20: #{tpu_custom_call.1} parent=1 // pred_region
      _
    $region21: #{tpu_custom_call.1} parent=1 // pred_fallthru
      _
    // Predicated region
    $region22: #{tpu_custom_call.1} parent=1 // pred_check
      _
    $region23: #{tpu_custom_call.1} parent=1 // pred_check_branch
      %26 = sbr.rel (0) target = $region25
    $region24: #{tpu_custom_call.1} parent=1 // pred_region
      _
    $region25: #{tpu_custom_call.1} parent=1 // pred_fallthru
      _
    // Predicated region
    $region26: #{tpu_custom_call.1} parent=1 // pred_check
      _
    $region27: #{tpu_custom_call.1} parent=1 // pred_check_branch
      %28 = sbr.rel (0) target = $region29
    $region28: #{tpu_custom_call.1} parent=1 // pred_region
      _
    $region29: #{tpu_custom_call.1} parent=1 // pred_fallthru
      _
    %v29 = vld [vmem:[%s0] sm:$0xff]
    %v30 = vld [vmem:[%s0 + $0x8] sm:$0xff]
    %v31 = vld [vmem:[%s0 + $0x10] sm:$0xff]
    %v32 = vld [vmem:[%s0 + $0x18] sm:$0xff]
    %v33 = vld [vmem:[%s0 + $0x20] sm:$0xff]
    %v34 = vld [vmem:[%s0 + $0x28] sm:$0xff]
    %v35 = vld [vmem:[%s0 + $0x30] sm:$0xff]
    %v36 = vld [vmem:[%s0 + $0x38] sm:$0xff]
    %v37 = vld [vmem:[%s0 + $0x40] sm:$0xff]
    %v38 = vld [vmem:[%s0 + $0x48] sm:$0xff]
    %v39 = vld [vmem:[%s0 + $0x50] sm:$0xff]
    %v40 = vld [vmem:[%s0 + $0x58] sm:$0xff]
    %v41 = vld [vmem:[%s0 + $0x60] sm:$0xff]
    %v42 = vld [vmem:[%s0 + $0x68] sm:$0xff]
    %v43 = vld [vmem:[%s0 + $0x70] sm:$0xff]
    %v44 = vld [vmem:[%s0 + $0x78] sm:$0xff]
    %v45 = vld [vmem:[%s1] sm:$0xff]
    %v46 = vld [vmem:[%s1 + $0x8] sm:$0xff]
    %v47 = vld [vmem:[%s1 + $0x10] sm:$0xff]
    %v48 = vld [vmem:[%s1 + $0x18] sm:$0x3f]
    %v49 = vld [vmem:[%s2] sm:$0x1]
    %v51 = vlaneseq
    %v52 = vshrl.u32 %v51, 7
    %v53 = vsub.s32 0, %v52
    %v54 = vrot.slane %v49, %v53
    %vm56 = vcmask 244736
    %v58 = vsel %vm56, %v29, 0
    %v61 = vsel %vm56, %v30, 0
    %v64 = vsel %vm56, %v31, 0
    %v67 = vsel %vm56, %v32, 0
    %v70 = vsel %vm56, %v33, 0
    %v73 = vsel %vm56, %v34, 0
    %v76 = vsel %vm56, %v35, 0
    %v79 = vsel %vm56, %v36, 0
    %v82 = vsel %vm56, %v37, 0
    %v85 = vsel %vm56, %v38, 0
    %v88 = vsel %vm56, %v39, 0
    %v91 = vsel %vm56, %v40, 0
    %v94 = vsel %vm56, %v41, 0
    %v97 = vsel %vm56, %v42, 0
    %v100 = vsel %vm56, %v43, 0
    %v103 = vsel %vm56, %v44, 0
    %vm105 = vcmask 1045504
    %v107 = vsel %vm105, %v48, 0
    %109 = vmatprep.subr.mxu0 0.0
    %110 = vmatpush1.msra.mxu0 0.0
    %111 = vmatprep.subr.mxu0 0.0
    %112 = vmatpush1.msra.mxu0 0.0
    %113 = vmatprep.subr.mxu0 0.0
    %114 = vmatpush1.msra.mxu0 0.0
    %115 = vmatprep.subr.mxu0 0.0
    %116 = vmatpush1.msra.mxu0 0.0
    %117 = vmatprep.subr.mxu0 0.0
    %118 = vmatpush1.msra.mxu0 0.0
    %119 = vmatprep.subr.mxu0 0.0
    %120 = vmatpush1.msra.mxu0 0.0
    %121 = vmatprep.subr.mxu0 0.0
    %122 = vmatpush1.msra.mxu0 0.0
    %123 = vmatprep.subr.mxu0 0.0
    %124 = vmatpush1.msra.mxu0 0.0
    %125 = vmatprep.subr.mxu0 0.0
    %126 = vmatpush1.msra.mxu0 0.0
    %127 = vmatprep.subr.mxu0 0.0
    %128 = vmatpush1.msra.mxu0 0.0
    %129 = vmatprep.subr.mxu0 0.0
    %130 = vmatpush1.msra.mxu0 0.0
    %131 = vmatprep.subr.mxu0 0.0
    %132 = vmatpush1.msra.mxu0 0.0
    %133 = vmatprep.subr.mxu0 0.0
    %134 = vmatpush1.msra.mxu0 %v107
    %135 = vmatprep.subr.mxu0 0.0
    %136 = vmatpush1.msra.mxu0 %v47
    %137 = vmatprep.subr.mxu0 0.0
    %138 = vmatpush1.msra.mxu0 %v46
    %139 = vmatprep.subr.mxu0 0.0
    %140 = vmatpush1.msra.mxu0 %v45
    %141 = vmatprep.subr.mxu0 0.0
    %142 = vmatpush2.msra.mxu0 0.0
    %143 = vmatprep.subr.mxu0 0.0
    %144 = vmatpush2.msra.mxu0 0.0
    %145 = vmatprep.subr.mxu0 0.0
    %146 = vmatpush2.msra.mxu0 0.0
    %147 = vmatprep.subr.mxu0 0.0
    %148 = vmatpush2.msra.mxu0 0.0
    %149 = vmatprep.subr.mxu0 0.0
    %150 = vmatpush2.msra.mxu0 0.0
    %151 = vmatprep.subr.mxu0 0.0
    %152 = vmatpush2.msra.mxu0 0.0
    %153 = vmatprep.subr.mxu0 0.0
    %154 = vmatpush2.msra.mxu0 0.0
    %155 = vmatprep.subr.mxu0 0.0
    %156 = vmatpush2.msra.mxu0 0.0
    %157 = vmatprep.subr.mxu0 0.0
    %158 = vmatpush2.msra.mxu0 0.0
    %159 = vmatprep.subr.mxu0 0.0
    %160 = vmatpush2.msra.mxu0 0.0
    %161 = vmatprep.subr.mxu0 0.0
    %162 = vmatpush2.msra.mxu0 0.0
    %163 = vmatprep.subr.mxu0 0.0
    %164 = vmatpush2.msra.mxu0 0.0
    %165 = vmatprep.subr.mxu0 0.0
    %166 = vmatpush2.msra.mxu0 0.0
    %167 = vmatprep.subr.mxu0 0.0
    %168 = vmatpush2.msra.mxu0 0.0
    %169 = vmatprep.subr.mxu0 0.0
    %170 = vmatpush2.msra.mxu0 0.0
    %171 = vmatprep.subr.mxu0 0.0
    %172 = vmatpush2.msra.mxu0 0.0
    %173 = vmatprep.mubr.f32.mxu0 0.0
    %174 = vmatmul.mubr.f32.gmra.mxu0 %v58
    %v175 = vpop.f32.mrf.mxu0
    %v176 = vadd.f32 %v54, %v175
    %v177 = vpop.f32.mrf.mxu0
    %178 = vmatprep.mubr.f32.mxu0 0.0
    %179 = vmatmul.mubr.f32.gmra.mxu0 %v61
    %v180 = vpop.f32.mrf.mxu0
    %v181 = vadd.f32 %v54, %v180
    %v182 = vpop.f32.mrf.mxu0
    %183 = vmatprep.mubr.f32.mxu0 0.0
    %184 = vmatmul.mubr.f32.gmra.mxu0 %v64
    %v185 = vpop.f32.mrf.mxu0
    %v186 = vadd.f32 %v54, %v185
    %v187 = vpop.f32.mrf.mxu0
    %188 = vmatprep.mubr.f32.mxu0 0.0
    %189 = vmatmul.mubr.f32.gmra.mxu0 %v67
    %v190 = vpop.f32.mrf.mxu0
    %v191 = vadd.f32 %v54, %v190
    %v192 = vpop.f32.mrf.mxu0
    %193 = vmatprep.mubr.f32.mxu0 0.0
    %194 = vmatmul.mubr.f32.gmra.mxu0 %v70
    %v195 = vpop.f32.mrf.mxu0
    %v196 = vadd.f32 %v54, %v195
    %v197 = vpop.f32.mrf.mxu0
    %198 = vmatprep.mubr.f32.mxu0 0.0
    %199 = vmatmul.mubr.f32.gmra.mxu0 %v73
    %v200 = vpop.f32.mrf.mxu0
    %v201 = vadd.f32 %v54, %v200
    %v202 = vpop.f32.mrf.mxu0
    %203 = vmatprep.mubr.f32.mxu0 0.0
    %204 = vmatmul.mubr.f32.gmra.mxu0 %v76
    %v205 = vpop.f32.mrf.mxu0
    %v206 = vadd.f32 %v54, %v205
    %v207 = vpop.f32.mrf.mxu0
    %208 = vmatprep.mubr.f32.mxu0 0.0
    %209 = vmatmul.mubr.f32.gmra.mxu0 %v79
    %v210 = vpop.f32.mrf.mxu0
    %v211 = vadd.f32 %v54, %v210
    %v212 = vpop.f32.mrf.mxu0
    %213 = vmatprep.mubr.f32.mxu0 0.0
    %214 = vmatmul.mubr.f32.gmra.mxu0 %v82
    %v215 = vpop.f32.mrf.mxu0
    %v216 = vadd.f32 %v54, %v215
    %v217 = vpop.f32.mrf.mxu0
    %218 = vmatprep.mubr.f32.mxu0 0.0
    %219 = vmatmul.mubr.f32.gmra.mxu0 %v85
    %v220 = vpop.f32.mrf.mxu0
    %v221 = vadd.f32 %v54, %v220
    %v222 = vpop.f32.mrf.mxu0
    %223 = vmatprep.mubr.f32.mxu0 0.0
    %224 = vmatmul.mubr.f32.gmra.mxu0 %v88
    %v225 = vpop.f32.mrf.mxu0
    %v226 = vadd.f32 %v54, %v225
    %v227 = vpop.f32.mrf.mxu0
    %228 = vmatprep.mubr.f32.mxu0 0.0
    %229 = vmatmul.mubr.f32.gmra.mxu0 %v91
    %v230 = vpop.f32.mrf.mxu0
    %v231 = vadd.f32 %v54, %v230
    %v232 = vpop.f32.mrf.mxu0
    %233 = vmatprep.mubr.f32.mxu0 0.0
    %234 = vmatmul.mubr.f32.gmra.mxu0 %v94
    %v235 = vpop.f32.mrf.mxu0
    %v236 = vadd.f32 %v54, %v235
    %v237 = vpop.f32.mrf.mxu0
    %238 = vmatprep.mubr.f32.mxu0 0.0
    %239 = vmatmul.mubr.f32.gmra.mxu0 %v97
    %v240 = vpop.f32.mrf.mxu0
    %v241 = vadd.f32 %v54, %v240
    %v242 = vpop.f32.mrf.mxu0
    %243 = vmatprep.mubr.f32.mxu0 0.0
    %244 = vmatmul.mubr.f32.gmra.mxu0 %v100
    %v245 = vpop.f32.mrf.mxu0
    %v246 = vadd.f32 %v54, %v245
    %v247 = vpop.f32.mrf.mxu0
    %248 = vmatprep.mubr.f32.mxu0 0.0
    %249 = vmatmul.mubr.f32.gmra.mxu0 %v103
    %v250 = vpop.f32.mrf.mxu0
    %v251 = vadd.f32 %v54, %v250
    %v252 = vpop.f32.mrf.mxu0
    %253 = vdwg.mxu0
    %v254 = vmax.f32 %v176, 0.0
    %v255 = vmax.f32 %v181, 0.0
    %v256 = vmax.f32 %v186, 0.0
    %v257 = vmax.f32 %v191, 0.0
    %v258 = vmax.f32 %v196, 0.0
    %v259 = vmax.f32 %v201, 0.0
    %v260 = vmax.f32 %v206, 0.0
    %v261 = vmax.f32 %v211, 0.0
    %v262 = vmax.f32 %v216, 0.0
    %v263 = vmax.f32 %v221, 0.0
    %v264 = vmax.f32 %v226, 0.0
    %v265 = vmax.f32 %v231, 0.0
    %v266 = vmax.f32 %v236, 0.0
    %v267 = vmax.f32 %v241, 0.0
    %v268 = vmax.f32 %v246, 0.0
    %v269 = vmax.f32 %v251, 0.0
    %v270 = vld [vmem:[%s3] sm:$0xff]
    %v271 = vld [vmem:[%s3 + $0x8] sm:$0xff]
    %v272 = vld [vmem:[%s3 + $0x10] sm:$0xff]
    %v273 = vld [vmem:[%s3 + $0x18] sm:$0xff]
    %v274 = vld [vmem:[%s3 + $0x20] sm:$0xff]
    %v275 = vld [vmem:[%s3 + $0x28] sm:$0xff]
    %v276 = vld [vmem:[%s3 + $0x30] sm:$0x3]
    %v277 = vld [vmem:[%s4] sm:$0x1]
    %v279 = vlaneseq
    %v280 = vshrl.u32 %v279, 7
    %v281 = vsub.s32 0, %v280
    %v282 = vrot.slane %v277, %v281
    %vm284 = vcmask 408576
    %v286 = vsel %vm284, %v254, 0
    %v289 = vsel %vm284, %v255, 0
    %v292 = vsel %vm284, %v256, 0
    %v295 = vsel %vm284, %v257, 0
    %v298 = vsel %vm284, %v258, 0
    %v301 = vsel %vm284, %v259, 0
    %v304 = vsel %vm284, %v260, 0
    %v307 = vsel %vm284, %v261, 0
    %v310 = vsel %vm284, %v262, 0
    %v313 = vsel %vm284, %v263, 0
    %v316 = vsel %vm284, %v264, 0
    %v319 = vsel %vm284, %v265, 0
    %v322 = vsel %vm284, %v266, 0
    %v325 = vsel %vm284, %v267, 0
    %v328 = vsel %vm284, %v268, 0
    %v331 = vsel %vm284, %v269, 0
    %vm333 = vcmask 1041408
    %v335 = vsel %vm333, %v276, 0
    %337 = vmatprep.subr.mxu0 0.0
    %338 = vmatpush1.msra.mxu0 0.0
    %339 = vmatprep.subr.mxu0 0.0
    %340 = vmatpush1.msra.mxu0 0.0
    %341 = vmatprep.subr.mxu0 0.0
    %342 = vmatpush1.msra.mxu0 0.0
    %343 = vmatprep.subr.mxu0 0.0
    %344 = vmatpush1.msra.mxu0 0.0
    %345 = vmatprep.subr.mxu0 0.0
    %346 = vmatpush1.msra.mxu0 0.0
    %347 = vmatprep.subr.mxu0 0.0
    %348 = vmatpush1.msra.mxu0 0.0
    %349 = vmatprep.subr.mxu0 0.0
    %350 = vmatpush1.msra.mxu0 0.0
    %351 = vmatprep.subr.mxu0 0.0
    %352 = vmatpush1.msra.mxu0 0.0
    %353 = vmatprep.subr.mxu0 0.0
    %354 = vmatpush1.msra.mxu0 0.0
    %355 = vmatprep.subr.mxu0 0.0
    %356 = vmatpush1.msra.mxu0 %v335
    %357 = vmatprep.subr.mxu0 0.0
    %358 = vmatpush1.msra.mxu0 %v275
    %359 = vmatprep.subr.mxu0 0.0
    %360 = vmatpush1.msra.mxu0 %v274
    %361 = vmatprep.subr.mxu0 0.0
    %362 = vmatpush1.msra.mxu0 %v273
    %363 = vmatprep.subr.mxu0 0.0
    %364 = vmatpush1.msra.mxu0 %v272
    %365 = vmatprep.subr.mxu0 0.0
    %366 = vmatpush1.msra.mxu0 %v271
    %367 = vmatprep.subr.mxu0 0.0
    %368 = vmatpush1.msra.mxu0 %v270
    %369 = vmatprep.subr.mxu0 0.0
    %370 = vmatpush2.msra.mxu0 0.0
    %371 = vmatprep.subr.mxu0 0.0
    %372 = vmatpush2.msra.mxu0 0.0
    %373 = vmatprep.subr.mxu0 0.0
    %374 = vmatpush2.msra.mxu0 0.0
    %375 = vmatprep.subr.mxu0 0.0
    %376 = vmatpush2.msra.mxu0 0.0
    %377 = vmatprep.subr.mxu0 0.0
    %378 = vmatpush2.msra.mxu0 0.0
    %379 = vmatprep.subr.mxu0 0.0
    %380 = vmatpush2.msra.mxu0 0.0
    %381 = vmatprep.subr.mxu0 0.0
    %382 = vmatpush2.msra.mxu0 0.0
    %383 = vmatprep.subr.mxu0 0.0
    %384 = vmatpush2.msra.mxu0 0.0
    %385 = vmatprep.subr.mxu0 0.0
    %386 = vmatpush2.msra.mxu0 0.0
    %387 = vmatprep.subr.mxu0 0.0
    %388 = vmatpush2.msra.mxu0 0.0
    %389 = vmatprep.subr.mxu0 0.0
    %390 = vmatpush2.msra.mxu0 0.0
    %391 = vmatprep.subr.mxu0 0.0
    %392 = vmatpush2.msra.mxu0 0.0
    %393 = vmatprep.subr.mxu0 0.0
    %394 = vmatpush2.msra.mxu0 0.0
    %395 = vmatprep.subr.mxu0 0.0
    %396 = vmatpush2.msra.mxu0 0.0
    %397 = vmatprep.subr.mxu0 0.0
    %398 = vmatpush2.msra.mxu0 0.0
    %399 = vmatprep.subr.mxu0 0.0
    %400 = vmatpush2.msra.mxu0 0.0
    %401 = vmatprep.mubr.f32.mxu0 0.0
    %402 = vmatmul.mubr.f32.gmra.mxu0 %v286
    %v403 = vpop.f32.mrf.mxu0
    %v404 = vadd.f32 %v282, %v403
    %v405 = vpop.f32.mrf.mxu0
    %406 = vmatprep.mubr.f32.mxu0 0.0
    %407 = vmatmul.mubr.f32.gmra.mxu0 %v289
    %v408 = vpop.f32.mrf.mxu0
    %v409 = vadd.f32 %v282, %v408
    %v410 = vpop.f32.mrf.mxu0
    %411 = vmatprep.mubr.f32.mxu0 0.0
    %412 = vmatmul.mubr.f32.gmra.mxu0 %v292
    %v413 = vpop.f32.mrf.mxu0
    %v414 = vadd.f32 %v282, %v413
    %v415 = vpop.f32.mrf.mxu0
    %416 = vmatprep.mubr.f32.mxu0 0.0
    %417 = vmatmul.mubr.f32.gmra.mxu0 %v295
    %v418 = vpop.f32.mrf.mxu0
    %v419 = vadd.f32 %v282, %v418
    %v420 = vpop.f32.mrf.mxu0
    %421 = vmatprep.mubr.f32.mxu0 0.0
    %422 = vmatmul.mubr.f32.gmra.mxu0 %v298
    %v423 = vpop.f32.mrf.mxu0
    %v424 = vadd.f32 %v282, %v423
    %v425 = vpop.f32.mrf.mxu0
    %426 = vmatprep.mubr.f32.mxu0 0.0
    %427 = vmatmul.mubr.f32.gmra.mxu0 %v301
    %v428 = vpop.f32.mrf.mxu0
    %v429 = vadd.f32 %v282, %v428
    %v430 = vpop.f32.mrf.mxu0
    %431 = vmatprep.mubr.f32.mxu0 0.0
    %432 = vmatmul.mubr.f32.gmra.mxu0 %v304
    %v433 = vpop.f32.mrf.mxu0
    %v434 = vadd.f32 %v282, %v433
    %v435 = vpop.f32.mrf.mxu0
    %436 = vmatprep.mubr.f32.mxu0 0.0
    %437 = vmatmul.mubr.f32.gmra.mxu0 %v307
    %v438 = vpop.f32.mrf.mxu0
    %v439 = vadd.f32 %v282, %v438
    %v440 = vpop.f32.mrf.mxu0
    %441 = vmatprep.mubr.f32.mxu0 0.0
    %442 = vmatmul.mubr.f32.gmra.mxu0 %v310
    %v443 = vpop.f32.mrf.mxu0
    %v444 = vadd.f32 %v282, %v443
    %v445 = vpop.f32.mrf.mxu0
    %446 = vmatprep.mubr.f32.mxu0 0.0
    %447 = vmatmul.mubr.f32.gmra.mxu0 %v313
    %v448 = vpop.f32.mrf.mxu0
    %v449 = vadd.f32 %v282, %v448
    %v450 = vpop.f32.mrf.mxu0
    %451 = vmatprep.mubr.f32.mxu0 0.0
    %452 = vmatmul.mubr.f32.gmra.mxu0 %v316
    %v453 = vpop.f32.mrf.mxu0
    %v454 = vadd.f32 %v282, %v453
    %v455 = vpop.f32.mrf.mxu0
    %456 = vmatprep.mubr.f32.mxu0 0.0
    %457 = vmatmul.mubr.f32.gmra.mxu0 %v319
    %v458 = vpop.f32.mrf.mxu0
    %v459 = vadd.f32 %v282, %v458
    %v460 = vpop.f32.mrf.mxu0
    %461 = vmatprep.mubr.f32.mxu0 0.0
    %462 = vmatmul.mubr.f32.gmra.mxu0 %v322
    %v463 = vpop.f32.mrf.mxu0
    %v464 = vadd.f32 %v282, %v463
    %v465 = vpop.f32.mrf.mxu0
    %466 = vmatprep.mubr.f32.mxu0 0.0
    %467 = vmatmul.mubr.f32.gmra.mxu0 %v325
    %v468 = vpop.f32.mrf.mxu0
    %v469 = vadd.f32 %v282, %v468
    %v470 = vpop.f32.mrf.mxu0
    %471 = vmatprep.mubr.f32.mxu0 0.0
    %472 = vmatmul.mubr.f32.gmra.mxu0 %v328
    %v473 = vpop.f32.mrf.mxu0
    %v474 = vadd.f32 %v282, %v473
    %v475 = vpop.f32.mrf.mxu0
    %476 = vmatprep.mubr.f32.mxu0 0.0
    %477 = vmatmul.mubr.f32.gmra.mxu0 %v331
    %v478 = vpop.f32.mrf.mxu0
    %v479 = vadd.f32 %v282, %v478
    %v480 = vpop.f32.mrf.mxu0
    %481 = vdwg.mxu0
    %v482 = vmax.f32 %v404, 0.0
    %v483 = vmax.f32 %v409, 0.0
    %v484 = vmax.f32 %v414, 0.0
    %v485 = vmax.f32 %v419, 0.0
    %v486 = vmax.f32 %v424, 0.0
    %v487 = vmax.f32 %v429, 0.0
    %v488 = vmax.f32 %v434, 0.0
    %v489 = vmax.f32 %v439, 0.0
    %v490 = vmax.f32 %v444, 0.0
    %v491 = vmax.f32 %v449, 0.0
    %v492 = vmax.f32 %v454, 0.0
    %v493 = vmax.f32 %v459, 0.0
    %v494 = vmax.f32 %v464, 0.0
    %v495 = vmax.f32 %v469, 0.0
    %v496 = vmax.f32 %v474, 0.0
    %v497 = vmax.f32 %v479, 0.0
    %v498 = vld [vmem:[%s5] sm:$0x1]
    %v499 = vld [vmem:[#allocation2] sm:$0x1]
    %501 = vset.pattern.permute.xlu0 0
    %502 = vperm.xlu0 %501, %v499
    %v503 = vpop.permute.xlu0 %502
    %v505 = vlaneseq
    %v506 = vshrl.u32 %v505, 7
    %v507 = vsub.s32 0, %v506
    %v508 = vrot.slane %v503, %v507
    %v510 = vsel %vm284, %v498, 0
    %v513 = vsel %vm284, %v482, 0
    %v516 = vsel %vm284, %v483, 0
    %v519 = vsel %vm284, %v484, 0
    %v522 = vsel %vm284, %v485, 0
    %v525 = vsel %vm284, %v486, 0
    %v528 = vsel %vm284, %v487, 0
    %v531 = vsel %vm284, %v488, 0
    %v534 = vsel %vm284, %v489, 0
    %v537 = vsel %vm284, %v490, 0
    %v540 = vsel %vm284, %v491, 0
    %v543 = vsel %vm284, %v492, 0
    %v546 = vsel %vm284, %v493, 0
    %v549 = vsel %vm284, %v494, 0
    %v552 = vsel %vm284, %v495, 0
    %v555 = vsel %vm284, %v496, 0
    %v558 = vsel %vm284, %v497, 0
    %560 = vmatprep.subr.mxu0 0.0
    %561 = vmatpush1.xpose.msra.mxu0 %v558
    %562 = vmatprep.subr.mxu0 0.0
    %563 = vmatpush1.xpose.msra.mxu0 %v555
    %564 = vmatprep.subr.mxu0 0.0
    %565 = vmatpush1.xpose.msra.mxu0 %v552
    %566 = vmatprep.subr.mxu0 0.0
    %567 = vmatpush1.xpose.msra.mxu0 %v549
    %568 = vmatprep.subr.mxu0 0.0
    %569 = vmatpush1.xpose.msra.mxu0 %v546
    %570 = vmatprep.subr.mxu0 0.0
    %571 = vmatpush1.xpose.msra.mxu0 %v543
    %572 = vmatprep.subr.mxu0 0.0
    %573 = vmatpush1.xpose.msra.mxu0 %v540
    %574 = vmatprep.subr.mxu0 0.0
    %575 = vmatpush1.xpose.msra.mxu0 %v537
    %576 = vmatprep.subr.mxu0 0.0
    %577 = vmatpush1.xpose.msra.mxu0 %v534
    %578 = vmatprep.subr.mxu0 0.0
    %579 = vmatpush1.xpose.msra.mxu0 %v531
    %580 = vmatprep.subr.mxu0 0.0
    %581 = vmatpush1.xpose.msra.mxu0 %v528
    %582 = vmatprep.subr.mxu0 0.0
    %583 = vmatpush1.xpose.msra.mxu0 %v525
    %584 = vmatprep.subr.mxu0 0.0
    %585 = vmatpush1.xpose.msra.mxu0 %v522
    %586 = vmatprep.subr.mxu0 0.0
    %587 = vmatpush1.xpose.msra.mxu0 %v519
    %588 = vmatprep.subr.mxu0 0.0
    %589 = vmatpush1.xpose.msra.mxu0 %v516
    %590 = vmatprep.subr.mxu0 0.0
    %591 = vmatpush1.xpose.msra.mxu0 %v513
    %592 = vmatprep.subr.mxu0 0.0
    %593 = vmatpush2.xpose.msra.mxu0 0.0
    %594 = vmatprep.subr.mxu0 0.0
    %595 = vmatpush2.xpose.msra.mxu0 0.0
    %596 = vmatprep.subr.mxu0 0.0
    %597 = vmatpush2.xpose.msra.mxu0 0.0
    %598 = vmatprep.subr.mxu0 0.0
    %599 = vmatpush2.xpose.msra.mxu0 0.0
    %600 = vmatprep.subr.mxu0 0.0
    %601 = vmatpush2.xpose.msra.mxu0 0.0
    %602 = vmatprep.subr.mxu0 0.0
    %603 = vmatpush2.xpose.msra.mxu0 0.0
    %604 = vmatprep.subr.mxu0 0.0
    %605 = vmatpush2.xpose.msra.mxu0 0.0
    %606 = vmatprep.subr.mxu0 0.0
    %607 = vmatpush2.xpose.msra.mxu0 0.0
    %608 = vmatprep.subr.mxu0 0.0
    %609 = vmatpush2.xpose.msra.mxu0 0.0
    %610 = vmatprep.subr.mxu0 0.0
    %611 = vmatpush2.xpose.msra.mxu0 0.0
    %612 = vmatprep.subr.mxu0 0.0
    %613 = vmatpush2.xpose.msra.mxu0 0.0
    %614 = vmatprep.subr.mxu0 0.0
    %615 = vmatpush2.xpose.msra.mxu0 0.0
    %616 = vmatprep.subr.mxu0 0.0
    %617 = vmatpush2.xpose.msra.mxu0 0.0
    %618 = vmatprep.subr.mxu0 0.0
    %619 = vmatpush2.xpose.msra.mxu0 0.0
    %620 = vmatprep.subr.mxu0 0.0
    %621 = vmatpush2.xpose.msra.mxu0 0.0
    %622 = vmatprep.subr.mxu0 0.0
    %623 = vmatpush2.xpose.msra.mxu0 0.0
    %624 = vmatprep.mubr.f32.mxu0 0.0
    %625 = vmatmul.mubr.f32.gmra.mxu0 %v510
    %v626 = vpop.f32.mrf.mxu0
    %v627 = vadd.f32 %v508, %v626
    %v628 = vpop.f32.mrf.mxu0
    %629 = vdwg.mxu0
    %v630 = vsub.f32 0.0, %v627
    %v631 = vmul.f32 %v630, 1.442695
    %v632 = vpow.pop %v631
    %v633 = vadd.f32 %v632, 1.0
    %v634 = vrcp.pop %v633
    %635 = vst [vmem:[#allocation3] sm:$0x1] %v634
    // Predicated region
    $region30: #{tpu_custom_call.1} parent=1 // pred_check
      _
    $region31: #{tpu_custom_call.1} parent=1 // pred_check_branch
      %637 = sbr.rel (0) target = $region33
    $region32: #{tpu_custom_call.1} parent=1 // pred_region
      %s639 = ssub.s32 16, 16
      %640 = vsyncadd [#allocation4], %s639
      %s642 = sshll.u32 [#allocation3], 4
      %s643 = int_to_ptr.vmem [resolvable:$true] %s642
      %645 = dma.vmem_to_hbm [thread:$0]  %s643, 16, %s7, [#allocation4]
    $region33: #{tpu_custom_call.1} parent=1 // pred_fallthru
      _
    // Predicated region
    $region34: #{tpu_custom_call.1} parent=1 // pred_check
      _
    $region35: #{tpu_custom_call.1} parent=1 // pred_check_branch
      %647 = sbr.rel (0) target = $region37
    $region36: #{tpu_custom_call.1} parent=1 // pred_region
      %648 = dma.done [#allocation4], 16
    $region37: #{tpu_custom_call.1} parent=1 // pred_fallthru
      _
    %649 = vsyncpa [#allocation4], 1

</llo_original>
